<compile_context>
chip_gen: v7x
topology: tpu7x:2x2x1
jax: 0.10.0
libtpu: 0.0.40
codegen_flags: <defaults>
</compile_context>

<pallas_src>
import math

import jax
import jax.numpy as jnp
from jax import lax
from jax.experimental import pallas as pl
from jax.experimental.pallas import tpu as pltpu

DIMS = 32             # `dims` in the module
HIDDEN = 100          # fixed by nn.Linear(dims, 100)
DEFAULT_TILE_N = 16384  # target rows of x per grid step (multiple of 128)


def _round_up(n, m):
    return ((n + m - 1) // m) * m


# ---------------------------------------------------------------------------
# Kernel 1: N-independent prologue (runs once).
#   loc_s = loc / var                        [K, D]
#   w_iv  = (-0.5 / var) * ones              [1, D]
#   bias  = log_norm - 0.5 * ||loc||^2 / var [K, 1]
# so that  log_prob[k, n] = bias[k] + w_iv . (x_n * x_n) + loc_s[k] . x_n
# ---------------------------------------------------------------------------
def agent_prologue_kernel(c_ref, w1_ref, w2_ref, b2_ref,
                          loc_s_ref, w_iv_ref, bias_ref):
    c = c_ref[...]                                                       # [K, D] f32
    k, d = c.shape

    # MLP: tanh(nn2(nn1(c))) * c   (nn1 has no bias; HIDDEN zero-padded to 128)
    h = jnp.dot(c, w1_ref[...], preferred_element_type=jnp.float32)     # [K, HP]
    loc = jnp.tanh(jnp.dot(h, w2_ref[...], preferred_element_type=jnp.float32)
                   + b2_ref[...])                                        # [K, D]
    loc = loc * c

    # torch.var(): unbiased variance over all elements of centroids.
    n_elem = k * d
    mean = jnp.sum(c) / n_elem
    var = jnp.sum((c - mean) ** 2) / (n_elem - 1)

    inv_var = 1.0 / var
    inv2var = -0.5 * inv_var                                             # -0.5 / var
    log_norm = -0.5 * d * (math.log(2.0 * math.pi) + jnp.log(var))
    l2 = jnp.sum(loc * loc, axis=-1, keepdims=True)                      # [K, 1]

    loc_s_ref[...] = loc * inv_var                                       # [K, D]
    w_iv_ref[...] = inv2var * jnp.ones((1, d), jnp.float32)              # [1, D]
    bias_ref[...] = log_norm + inv2var * l2                              # [K, 1]


# ---------------------------------------------------------------------------
# Kernel 2: streaming density over x (gridded over N, auto double-buffered).
# Output is written lane-dense as [K, TILE_N] (N on the 128-lane axis).
# ---------------------------------------------------------------------------
def agent_density_kernel(loc_s_ref, w_iv_ref, bias_ref, x_ref, o_ref):
    xv = x_ref[...].astype(jnp.float32)                                  # [TN, D]
    # cross[k, n] = sum_d loc_s[k, d] * x[n, d]   -> lane-dense [K, TN]
    cross = lax.dot_general(loc_s_ref[...], xv,
                            dimension_numbers=(((1,), (1,)), ((), ())),
                            preferred_element_type=jnp.float32)          # [K, TN]
    # x2[0, n] = (-0.5/var) * sum_d x[n, d]^2
    x2 = lax.dot_general(w_iv_ref[...], xv * xv,
                         dimension_numbers=(((1,), (1,)), ((), ())),
                         preferred_element_type=jnp.float32)             # [1, TN]
    o_ref[...] = jnp.exp(bias_ref[...] + x2 + cross)                     # [K, TN]


def agent_forward(centroids, x, w1, w2, b2, *, tile_n=None, return_kn=False):
    """centroids [K, D], x [N, D].  Torch layouts: w1 [HIDDEN, D] (nn1, bias=False),
    w2 [D, HIDDEN], b2 [D].

    Returns [N, K] == torch `exp(dist.log_prob(x)).T` (default), or the
    lane-dense [K, N] slab (no transpose pass) if return_kn=True."""
    centroids = jnp.asarray(centroids, jnp.float32)
    x = jnp.asarray(x)
    # Stream x as bf16 only if it already arrives as bf16 (a wrapper-side cast
    # would be its own HBM pass and net out negative); otherwise f32.
    if x.dtype != jnp.bfloat16:
        x = x.astype(jnp.float32)
    k, d = centroids.shape
    n = x.shape[0]

    # Matmul-friendly layouts; zero-pad HIDDEN 100 -> 128 lanes (numerically exact).
    w1_t = jnp.asarray(w1, jnp.float32).T                                # [D, HIDDEN]
    w2_t = jnp.asarray(w2, jnp.float32).T                                # [HIDDEN, D]
    hp = _round_up(HIDDEN, 128)
    w1_p = jnp.zeros((d, hp), jnp.float32).at[:, :HIDDEN].set(w1_t)
    w2_p = jnp.zeros((hp, d), jnp.float32).at[:HIDDEN, :].set(w2_t)
    b2_2d = jnp.asarray(b2, jnp.float32).reshape(1, d)

    # ---- Kernel 1: all N-independent work, exactly once. ----
    loc_s, w_iv, bias = pl.pallas_call(
        agent_prologue_kernel,
        out_shape=(jax.ShapeDtypeStruct((k, d), jnp.float32),
                   jax.ShapeDtypeStruct((1, d), jnp.float32),
                   jax.ShapeDtypeStruct((k, 1), jnp.float32)),
        in_specs=[pl.BlockSpec(memory_space=pltpu.MemorySpace.VMEM)] * 4,
        out_specs=(pl.BlockSpec(memory_space=pltpu.MemorySpace.VMEM),) * 3,
    )(centroids, w1_p, w2_p, b2_2d)

    # ---- Tile sizing: amortize ~0.35us/step, respect per-generation VMEM. ----
    # Real VMEM footprint counts the (8,128) lane padding of the D=32 minor dim
    # (32 -> 128 lanes, i.e. 4x nominal) and the double-buffering of each stream.
    x_itemsize = jnp.dtype(x.dtype).itemsize
    lanes = _round_up(d, 128)
    per_row = 2 * lanes * x_itemsize + 2 * _round_up(k, 8) * 4  # bytes of VMEM per N-row
    try:
        vmem_cap = int(pltpu.get_tpu_info().vmem_capacity_bytes)  # 64 MiB/TC on v7x, 128 MiB v5e/v6e
    except Exception:
        vmem_cap = 64 << 20  # conservative fallback (v7x per-TC)
    tn_cap = max(128, ((vmem_cap // 3) // per_row) // 128 * 128)  # keep 2/3 headroom
    desired = DEFAULT_TILE_N if tile_n is None else max(128, _round_up(int(tile_n), 128))
    tn_big = min(desired, tn_cap)

    if n > tn_big or n >= 4096:
        # >= 2 grid steps (v7x megacore gets work on both TCs); split evenly to
        # minimize zero-row padding; keep tiles lane-aligned (multiple of 128).
        num_blocks = max(2, -(-n // tn_big))
        tn = _round_up(-(-n // num_blocks), 128)
    else:
        num_blocks = 1
        tn = max(8, _round_up(n, 8))                 # single block == full array dims
    n_pad = num_blocks * tn
    if n_pad != n:
        x = jnp.pad(x, ((0, n_pad - n), (0, 0)))     # zero rows -> finite exp, sliced off

    # Explicitly raise the scoped-VMEM limit (defaults: 16 MiB v5e, 32 MiB v6e/v7x).
    vmem_limit = int(max(32 << 20, per_row * tn + (8 << 20)))

    cost = pl.CostEstimate(
        flops=int(2 * (k + 1) * d * n_pad),
        transcendentals=int(k * n_pad),
        bytes_accessed=int(n_pad * d * x_itemsize + k * n_pad * 4
                           + (k * d + d + k) * 4),
    )

    # ---- Kernel 2: stream x over an N grid with auto double-buffering. ----
    out_kn = pl.pallas_call(
        agent_density_kernel,
        out_shape=jax.ShapeDtypeStruct((k, n_pad), jnp.float32),
        grid=(num_blocks,),
        in_specs=[
            pl.BlockSpec((k, d), lambda i: (0, 0)),     # loc_s  (resident)
            pl.BlockSpec((1, d), lambda i: (0, 0)),     # w_iv   (resident)
            pl.BlockSpec((k, 1), lambda i: (0, 0)),     # bias   (resident)
            pl.BlockSpec((tn, d), lambda i: (i, 0)),    # x      (streamed)
        ],
        out_specs=pl.BlockSpec((k, tn), lambda i: (0, i)),  # lane-dense store
        compiler_params=pltpu.CompilerParams(
            dimension_semantics=("parallel",),
            vmem_limit_bytes=vmem_limit),
        cost_estimate=cost,
    )(loc_s, w_iv, bias, x)

    if return_kn:
        # Preferred for downstream fusion: avoids an extra read+write HBM pass.
        return out_kn[:, :n]
    # Torch-exact layout: exp(log_prob).T -> [N, K] (wrapper-side plumbing only).
    return out_kn[:, :n].T


# ---------------------------------------------------------------------------
# Pure-JAX reference for a correctness check.
# ---------------------------------------------------------------------------
def agent_reference(centroids, x, w1, w2, b2):
    h = jnp.dot(centroids, w1.T, precision=lax.Precision.HIGHEST)
    loc = jnp.tanh(jnp.dot(h, w2.T, precision=lax.Precision.HIGHEST) + b2) * centroids
    var = jnp.var(centroids, ddof=1)
    d = centroids.shape[1]
    diff = x[None, :, :] - loc[:, None, :]                               # [K, N, D]
    sq = jnp.sum(diff * diff, axis=-1)                                   # [K, N]
    log_prob = -0.5 * (d * jnp.log(2.0 * jnp.pi * var) + sq / var)
    return jnp.exp(log_prob).T                                           # [N, K]


if __name__ == "__main__":
    key = jax.random.PRNGKey(0)
    k_c, k_x, k_w1, k_w2, k_b2, k_x2 = jax.random.split(key, 6)

    K, N, D = 8, 16, DIMS                       # 8 centroids, 16 data points, dims=32
    centroids = jax.random.normal(k_c, (K, D), jnp.float32)
    x = jax.random.normal(k_x, (N, D), jnp.float32)

    # Deterministic nn.Linear-style init: U(-1/sqrt(fan_in), 1/sqrt(fan_in)).
    b1_bound = 1.0 / math.sqrt(D)
    w1 = jax.random.uniform(k_w1, (HIDDEN, D), jnp.float32, -b1_bound, b1_bound)   # nn1 (bias=False)
    b2_bound = 1.0 / math.sqrt(HIDDEN)
    w2 = jax.random.uniform(k_w2, (D, HIDDEN), jnp.float32, -b2_bound, b2_bound)   # nn2 weight
    b2 = jax.random.uniform(k_b2, (D,), jnp.float32, -b2_bound, b2_bound)          # nn2 bias

    # Small shape (single-block path).
    out = jax.block_until_ready(agent_forward(centroids, x, w1, w2, b2))
    assert out.shape == (N, K)
    ref = jax.block_until_ready(agent_reference(centroids, x, w1, w2, b2))
    assert jnp.allclose(out, ref, rtol=2e-2, atol=1e-30), \
        float(jnp.max(jnp.abs(out - ref)))

    # Moderate shape exercising the multi-block grid + zero-row padding path.
    N2 = 4200
    x2 = jax.random.normal(k_x2, (N2, D), jnp.float32)
    out2 = jax.block_until_ready(agent_forward(centroids, x2, w1, w2, b2))
    assert out2.shape == (N2, K)
    ref2 = jax.block_until_ready(agent_reference(centroids, x2, w1, w2, b2))
    assert jnp.allclose(out2, ref2, rtol=2e-2, atol=1e-30), \
        float(jnp.max(jnp.abs(out2 - ref2)))

    print("KERNEL_OK")
</pallas_src>

<mosaic_0001>
module attributes {stable_mosaic.version = 11 : i64} {
  func.func @agent_prologue_kernel(%arg0: memref<8x32xf32, #tpu.memory_space<vmem>>, %arg1: memref<32x128xf32, #tpu.memory_space<vmem>>, %arg2: memref<128x32xf32, #tpu.memory_space<vmem>>, %arg3: memref<1x32xf32, #tpu.memory_space<vmem>>, %arg4: memref<8x32xf32, #tpu.memory_space<vmem>>, %arg5: memref<1x32xf32, #tpu.memory_space<vmem>>, %arg6: memref<8x1xf32, #tpu.memory_space<vmem>>) attributes {dimension_semantics = [], scalar_prefetch = 0 : i64, scratch_operands = 0 : i64, tpu.core_type = #tpu.core_type<tc>} {
    %c0 = arith.constant 0 : index
    %c0_0 = arith.constant 0 : index
    %0 = vector.load %arg0[%c0, %c0_0] : memref<8x32xf32, #tpu.memory_space<vmem>>, vector<8x32xf32>
    %c0_1 = arith.constant 0 : index
    %c0_2 = arith.constant 0 : index
    %1 = vector.load %arg1[%c0_1, %c0_2] : memref<32x128xf32, #tpu.memory_space<vmem>>, vector<32x128xf32>
    %cst = arith.constant dense<0.000000e+00> : vector<8x128xf32>
    %2 = tpu.matmul %0, %1, %cst {dimension_numbers = #tpu.dot_dimension_numbers<[1], [0], [0], [1], [0, 0, 1, 1], [], []>} : vector<8x32xf32>, vector<32x128xf32>, vector<8x128xf32> -> vector<8x128xf32>
    %c0_3 = arith.constant 0 : index
    %c0_4 = arith.constant 0 : index
    %3 = vector.load %arg2[%c0_3, %c0_4] : memref<128x32xf32, #tpu.memory_space<vmem>>, vector<128x32xf32>
    %cst_5 = arith.constant dense<0.000000e+00> : vector<8x32xf32>
    %4 = tpu.matmul %2, %3, %cst_5 {dimension_numbers = #tpu.dot_dimension_numbers<[1], [0], [0], [1], [0, 0, 1, 1], [], []>} : vector<8x128xf32>, vector<128x32xf32>, vector<8x32xf32> -> vector<8x32xf32>
    %c0_6 = arith.constant 0 : index
    %c0_7 = arith.constant 0 : index
    %5 = vector.load %arg3[%c0_6, %c0_7] : memref<1x32xf32, #tpu.memory_space<vmem>>, vector<1x32xf32>
    %6 = vector.broadcast %5 : vector<1x32xf32> to vector<8x32xf32>
    %7 = arith.addf %4, %6 : vector<8x32xf32>
    %8 = math.tanh %7 : vector<8x32xf32>
    %9 = arith.mulf %8, %0 : vector<8x32xf32>
    %10 = vector.shape_cast %0 : vector<8x32xf32> to vector<1x8x32xf32>
    %cst_8 = arith.constant dense<0.000000e+00> : vector<1xf32>
    %11 = vector.multi_reduction <add>, %10, %cst_8 [1, 2] : vector<1x8x32xf32> to vector<1xf32>
    %12 = vector.shape_cast %11 : vector<1xf32> to vector<1x1x1xf32>
    %13 = vector.extract %12[0, 0, 0] : f32 from vector<1x1x1xf32>
    %cst_9 = arith.constant 2.560000e+02 : f32
    %14 = arith.divf %13, %cst_9 : f32
    %15 = vector.broadcast %14 : f32 to vector<8x32xf32>
    %16 = arith.subf %0, %15 : vector<8x32xf32>
    %17 = arith.mulf %16, %16 : vector<8x32xf32>
    %18 = vector.shape_cast %17 : vector<8x32xf32> to vector<1x8x32xf32>
    %cst_10 = arith.constant dense<0.000000e+00> : vector<1xf32>
    %19 = vector.multi_reduction <add>, %18, %cst_10 [1, 2] : vector<1x8x32xf32> to vector<1xf32>
    %20 = vector.shape_cast %19 : vector<1xf32> to vector<1x1x1xf32>
    %21 = vector.extract %20[0, 0, 0] : f32 from vector<1x1x1xf32>
    %cst_11 = arith.constant 2.550000e+02 : f32
    %22 = arith.divf %21, %cst_11 : f32
    %cst_12 = arith.constant 1.000000e+00 : f32
    %23 = arith.divf %cst_12, %22 : f32
    %cst_13 = arith.constant -5.000000e-01 : f32
    %24 = arith.mulf %cst_13, %23 : f32
    %25 = math.log %22 : f32
    %cst_14 = arith.constant 1.83787704 : f32
    %26 = arith.addf %cst_14, %25 : f32
    %cst_15 = arith.constant -1.600000e+01 : f32
    %27 = arith.mulf %cst_15, %26 : f32
    %28 = arith.mulf %9, %9 : vector<8x32xf32>
    %cst_16 = arith.constant dense<0.000000e+00> : vector<8xf32>
    %29 = vector.multi_reduction <add>, %28, %cst_16 [1] : vector<8x32xf32> to vector<8xf32>
    %30 = vector.shape_cast %29 : vector<8xf32> to vector<8x1xf32>
    %31 = vector.broadcast %23 : f32 to vector<8x32xf32>
    %32 = arith.mulf %9, %31 : vector<8x32xf32>
    %c0_17 = arith.constant 0 : index
    %c0_18 = arith.constant 0 : index
    %33 = vector.load %arg4[%c0_17, %c0_18] : memref<8x32xf32, #tpu.memory_space<vmem>>, vector<8x32xf32>
    tpu.vector_store %arg4[%c0_17, %c0_18], %32 {strides = array<i32>} : memref<8x32xf32, #tpu.memory_space<vmem>>, vector<8x32xf32>,
    %cst_19 = arith.constant 1.000000e+00 : f32
    %34 = vector.broadcast %cst_19 : f32 to vector<1x32xf32>
    %35 = vector.broadcast %24 : f32 to vector<1x32xf32>
    %36 = arith.mulf %35, %34 : vector<1x32xf32>
    %c0_20 = arith.constant 0 : index
    %c0_21 = arith.constant 0 : index
    %37 = vector.load %arg5[%c0_20, %c0_21] : memref<1x32xf32, #tpu.memory_space<vmem>>, vector<1x32xf32>
    tpu.vector_store %arg5[%c0_20, %c0_21], %36 {strides = array<i32>} : memref<1x32xf32, #tpu.memory_space<vmem>>, vector<1x32xf32>,
    %38 = vector.broadcast %24 : f32 to vector<8x1xf32>
    %39 = arith.mulf %38, %30 : vector<8x1xf32>
    %40 = vector.broadcast %27 : f32 to vector<8x1xf32>
    %41 = arith.addf %40, %39 : vector<8x1xf32>
    %c0_22 = arith.constant 0 : index
    %c0_23 = arith.constant 0 : index
    %42 = vector.load %arg6[%c0_22, %c0_23] : memref<8x1xf32, #tpu.memory_space<vmem>>, vector<8x1xf32>
    tpu.vector_store %arg6[%c0_22, %c0_23], %41 {strides = array<i32>} : memref<8x1xf32, #tpu.memory_space<vmem>>, vector<8x1xf32>,
    return
  }
}

</mosaic_0001>

<llo_original>
// kernel: tpu_custom_call.1
$region0: #{tpu_custom_call.1}
  #allocation0 [shape = 'u32[]', space=smem, size = 0x4, offset = 0x4, fixed_abs, tag = 'smem constant byte address 0x4 - core index']
  #allocation1 [shape = 'u32[144,128]{1,0:T(1,128)}', space=vmem, size = 0x12000, scoped, tag = 'internal scratch']
  %s0 = inlined_call_operand.vmem [shape: f32[8,32], index: 0, kind: input, shape index: {}]
  %s1 = inlined_call_operand.vmem [shape: f32[32,128], index: 1, kind: input, shape index: {}]
  %s2 = inlined_call_operand.vmem [shape: f32[128,32], index: 2, kind: input, shape index: {}]
  %s3 = inlined_call_operand.vmem [shape: f32[1,32], index: 3, kind: input, shape index: {}]
  %s4 = inlined_call_operand.hbm [shape: f32[8,32], index: 4, kind: output, shape index: {0}]
  %s5 = inlined_call_operand.hbm [shape: f32[1,32], index: 5, kind: output, shape index: {1}]
  %s6 = inlined_call_operand.vmem [shape: f32[8,1], index: 6, kind: output, shape index: {2}]
  %7 = xla_tuple %s4, %s5, %s6
  %s8 = sld [smem:[#allocation0]]
  $region42: #{tpu_custom_call.1} parent=0
    _
  %s10 = ssub.s32 1, %s8
  %s11 = scalar_select 0, %s10, %s8
  $region1: #{tpu_custom_call.1} parent=0
    #allocation2 [shape = 'u8[4096]{0}', space=vmem, size = 0x1000, scoped, tag = 'output window, operand 0, single buffered']
    #allocation3 [shape = 's32[1]{0}', space=sflag, size = 0x4, scoped, tag = 'scoped memory for tpu_custom_call.1']
    #allocation4 [shape = 'u8[512]{0}', space=vmem, size = 0x400, scoped, tag = 'output window, operand 1, single buffered']
    #allocation5 [shape = 's32[1]{0}', space=sflag, size = 0x4, scoped, tag = 'scoped memory for tpu_custom_call.1']
    %12 = vsyncpa [#allocation3], 0
    %13 = vsyncpa [#allocation5], 0
    // Predicated region
    $region2: #{tpu_custom_call.1} parent=1 // pred_check
      _
    $region3: #{tpu_custom_call.1} parent=1 // pred_check_branch
      %15 = sbr.rel (0) target = $region5
    $region4: #{tpu_custom_call.1} parent=1 // pred_region
      _
    $region5: #{tpu_custom_call.1} parent=1 // pred_fallthru
      _
    // Predicated region
    $region6: #{tpu_custom_call.1} parent=1 // pred_check
      _
    $region7: #{tpu_custom_call.1} parent=1 // pred_check_branch
      %17 = sbr.rel (0) target = $region9
    $region8: #{tpu_custom_call.1} parent=1 // pred_region
      _
    $region9: #{tpu_custom_call.1} parent=1 // pred_fallthru
      _
    // Predicated region
    $region10: #{tpu_custom_call.1} parent=1 // pred_check
      _
    $region11: #{tpu_custom_call.1} parent=1 // pred_check_branch
      %19 = sbr.rel (0) target = $region13
    $region12: #{tpu_custom_call.1} parent=1 // pred_region
      _
    $region13: #{tpu_custom_call.1} parent=1 // pred_fallthru
      _
    // Predicated region
    $region14: #{tpu_custom_call.1} parent=1 // pred_check
      _
    $region15: #{tpu_custom_call.1} parent=1 // pred_check_branch
      %21 = sbr.rel (0) target = $region17
    $region16: #{tpu_custom_call.1} parent=1 // pred_region
      _
    $region17: #{tpu_custom_call.1} parent=1 // pred_fallthru
      _
    %v22 = vld [vmem:[%s0] sm:$0xff]
    %v23 = vld [vmem:[%s1] sm:$0xff]
    %v24 = vld [vmem:[%s1 + $0x8] sm:$0xff]
    %v25 = vld [vmem:[%s1 + $0x10] sm:$0xff]
    %v26 = vld [vmem:[%s1 + $0x18] sm:$0xff]
    %vm27 = vcmask 261120
    %v29 = vsel %vm27, %v22, 0
    %31 = vmatprep.subr.mxu0 0.0
    %32 = vmatpush1.msra.mxu0 %v23
    %33 = vmatprep.subr.mxu0 0.0
    %34 = vmatpush1.msra.mxu0 %v24
    %35 = vmatprep.subr.mxu0 0.0
    %36 = vmatpush1.msra.mxu0 %v25
    %37 = vmatprep.subr.mxu0 0.0
    %38 = vmatpush1.msra.mxu0 %v26
    %39 = vmatprep.subr.mxu0 0.0
    %40 = vmatpush1.msra.mxu0 0.0
    %41 = vmatprep.subr.mxu0 0.0
    %42 = vmatpush1.msra.mxu0 0.0
    %43 = vmatprep.subr.mxu0 0.0
    %44 = vmatpush1.msra.mxu0 0.0
    %45 = vmatprep.subr.mxu0 0.0
    %46 = vmatpush1.msra.mxu0 0.0
    %47 = vmatprep.subr.mxu0 0.0
    %48 = vmatpush1.msra.mxu0 0.0
    %49 = vmatprep.subr.mxu0 0.0
    %50 = vmatpush1.msra.mxu0 0.0
    %51 = vmatprep.subr.mxu0 0.0
    %52 = vmatpush1.msra.mxu0 0.0
    %53 = vmatprep.subr.mxu0 0.0
    %54 = vmatpush1.msra.mxu0 0.0
    %55 = vmatprep.subr.mxu0 0.0
    %56 = vmatpush1.msra.mxu0 0.0
    %57 = vmatprep.subr.mxu0 0.0
    %58 = vmatpush1.msra.mxu0 0.0
    %59 = vmatprep.subr.mxu0 0.0
    %60 = vmatpush1.msra.mxu0 0.0
    %61 = vmatprep.subr.mxu0 0.0
    %62 = vmatpush1.msra.mxu0 0.0
    %63 = vmatprep.subr.mxu0 0.0
    %64 = vmatpush1.msra.mxu0 0.0
    %65 = vmatprep.subr.mxu0 0.0
    %66 = vmatpush1.msra.mxu0 0.0
    %67 = vmatprep.subr.mxu0 0.0
    %68 = vmatpush1.msra.mxu0 0.0
    %69 = vmatprep.subr.mxu0 0.0
    %70 = vmatpush1.msra.mxu0 0.0
    %71 = vmatprep.subr.mxu0 0.0
    %72 = vmatpush1.msra.mxu0 0.0
    %73 = vmatprep.subr.mxu0 0.0
    %74 = vmatpush1.msra.mxu0 0.0
    %75 = vmatprep.subr.mxu0 0.0
    %76 = vmatpush1.msra.mxu0 0.0
    %77 = vmatprep.subr.mxu0 0.0
    %78 = vmatpush1.msra.mxu0 0.0
    %79 = vmatprep.subr.mxu0 0.0
    %80 = vmatpush1.msra.mxu0 0.0
    %81 = vmatprep.subr.mxu0 0.0
    %82 = vmatpush1.msra.mxu0 0.0
    %83 = vmatprep.subr.mxu0 0.0
    %84 = vmatpush1.msra.mxu0 0.0
    %85 = vmatprep.subr.mxu0 0.0
    %86 = vmatpush1.msra.mxu0 0.0
    %87 = vmatprep.subr.mxu0 0.0
    %88 = vmatpush1.msra.mxu0 0.0
    %89 = vmatprep.subr.mxu0 0.0
    %90 = vmatpush1.msra.mxu0 0.0
    %91 = vmatprep.subr.mxu0 0.0
    %92 = vmatpush1.msra.mxu0 0.0
    %93 = vmatprep.subr.mxu0 0.0
    %94 = vmatpush1.msra.mxu0 0.0
    %95 = vmatprep.mubr.f32.mxu0 0.0
    %96 = vmatmul.mubr.f32.gmra.mrb[0].mxu0 %v29
    %v97 = vpop.f32.mrb[0].mxu0
    %v98 = vadd.f32 0.0, %v97
    %v99 = vpop.f32.mrb[0].mxu0
    %100 = vdwg.mxu0
    %v101 = vld [vmem:[%s2] sm:$0xff]
    %v102 = vld [vmem:[%s2 + $0x8] sm:$0xff]
    %v103 = vld [vmem:[%s2 + $0x10] sm:$0xff]
    %v104 = vld [vmem:[%s2 + $0x18] sm:$0xff]
    %v105 = vld [vmem:[%s2 + $0x20] sm:$0xff]
    %v106 = vld [vmem:[%s2 + $0x28] sm:$0xff]
    %v107 = vld [vmem:[%s2 + $0x30] sm:$0xff]
    %v108 = vld [vmem:[%s2 + $0x38] sm:$0xff]
    %v109 = vld [vmem:[%s2 + $0x40] sm:$0xff]
    %v110 = vld [vmem:[%s2 + $0x48] sm:$0xff]
    %v111 = vld [vmem:[%s2 + $0x50] sm:$0xff]
    %v112 = vld [vmem:[%s2 + $0x58] sm:$0xff]
    %v113 = vld [vmem:[%s2 + $0x60] sm:$0xff]
    %v114 = vld [vmem:[%s2 + $0x68] sm:$0xff]
    %v115 = vld [vmem:[%s2 + $0x70] sm:$0xff]
    %v116 = vld [vmem:[%s2 + $0x78] sm:$0xff]
    %v117 = vld [vmem:[%s3] sm:$0x1]
    %v119 = vlaneseq
    %v120 = vshrl.u32 %v119, 7
    %v121 = vsub.s32 0, %v120
    %v122 = vrot.slane %v117, %v121
    %124 = vmatprep.subr.mxu0 0.0
    %125 = vmatpush1.msra.mxu0 %v101
    %126 = vmatprep.subr.mxu0 0.0
    %127 = vmatpush1.msra.mxu0 %v102
    %128 = vmatprep.subr.mxu0 0.0
    %129 = vmatpush1.msra.mxu0 %v103
    %130 = vmatprep.subr.mxu0 0.0
    %131 = vmatpush1.msra.mxu0 %v104
    %132 = vmatprep.subr.mxu0 0.0
    %133 = vmatpush1.msra.mxu0 %v105
    %134 = vmatprep.subr.mxu0 0.0
    %135 = vmatpush1.msra.mxu0 %v106
    %136 = vmatprep.subr.mxu0 0.0
    %137 = vmatpush1.msra.mxu0 %v107
    %138 = vmatprep.subr.mxu0 0.0
    %139 = vmatpush1.msra.mxu0 %v108
    %140 = vmatprep.subr.mxu0 0.0
    %141 = vmatpush1.msra.mxu0 %v109
    %142 = vmatprep.subr.mxu0 0.0
    %143 = vmatpush1.msra.mxu0 %v110
    %144 = vmatprep.subr.mxu0 0.0
    %145 = vmatpush1.msra.mxu0 %v111
    %146 = vmatprep.subr.mxu0 0.0
    %147 = vmatpush1.msra.mxu0 %v112
    %148 = vmatprep.subr.mxu0 0.0
    %149 = vmatpush1.msra.mxu0 %v113
    %150 = vmatprep.subr.mxu0 0.0
    %151 = vmatpush1.msra.mxu0 %v114
    %152 = vmatprep.subr.mxu0 0.0
    %153 = vmatpush1.msra.mxu0 %v115
    %154 = vmatprep.subr.mxu0 0.0
    %155 = vmatpush1.msra.mxu0 %v116
    %156 = vmatprep.subr.mxu0 0.0
    %157 = vmatpush1.msra.mxu0 0.0
    %158 = vmatprep.subr.mxu0 0.0
    %159 = vmatpush1.msra.mxu0 0.0
    %160 = vmatprep.subr.mxu0 0.0
    %161 = vmatpush1.msra.mxu0 0.0
    %162 = vmatprep.subr.mxu0 0.0
    %163 = vmatpush1.msra.mxu0 0.0
    %164 = vmatprep.subr.mxu0 0.0
    %165 = vmatpush1.msra.mxu0 0.0
    %166 = vmatprep.subr.mxu0 0.0
    %167 = vmatpush1.msra.mxu0 0.0
    %168 = vmatprep.subr.mxu0 0.0
    %169 = vmatpush1.msra.mxu0 0.0
    %170 = vmatprep.subr.mxu0 0.0
    %171 = vmatpush1.msra.mxu0 0.0
    %172 = vmatprep.subr.mxu0 0.0
    %173 = vmatpush1.msra.mxu0 0.0
    %174 = vmatprep.subr.mxu0 0.0
    %175 = vmatpush1.msra.mxu0 0.0
    %176 = vmatprep.subr.mxu0 0.0
    %177 = vmatpush1.msra.mxu0 0.0
    %178 = vmatprep.subr.mxu0 0.0
    %179 = vmatpush1.msra.mxu0 0.0
    %180 = vmatprep.subr.mxu0 0.0
    %181 = vmatpush1.msra.mxu0 0.0
    %182 = vmatprep.subr.mxu0 0.0
    %183 = vmatpush1.msra.mxu0 0.0
    %184 = vmatprep.subr.mxu0 0.0
    %185 = vmatpush1.msra.mxu0 0.0
    %186 = vmatprep.subr.mxu0 0.0
    %187 = vmatpush1.msra.mxu0 0.0
    %188 = vmatprep.mubr.f32.mxu0 0.0
    %189 = vmatmul.mubr.f32.gmra.mrb[0].mxu0 %v98
    %v190 = vpop.f32.mrb[0].mxu0
    %v191 = vadd.f32 %v122, %v190
    %v192 = vpop.f32.mrb[0].mxu0
    %193 = vdwg.mxu0
    %v194 = vtanh.pop %v191
    %v195 = vmul.f32 %v194, %v22
    %v196 = vsel %vm27, %v22, 0.0
    %197 = vadd.xlane.f32.xlu0 %v196
    %v198 = vpop.xlane.xlu0 %197
    %v199 = vrot.slane %v198, 4
    %v200 = vadd.f32 %v198, %v199
    %v201 = vrot.slane %v200, 2
    %v202 = vadd.f32 %v200, %v201
    %v203 = vrot.slane %v202, 1
    %v204 = vadd.f32 %v202, %v203
    %s205 = vtos %v204
    %v206 = vrcp.pop 256.0
    %s207 = vtos %v206
    %s208 = smul.f32 %s205, %s207
    %v209 = vstv %s208
    %v210 = vsub.f32 %v22, %v209
    %v211 = vmul.f32 %v210, %v210
    %v212 = vsel %vm27, %v211, 0.0
    %213 = vadd.xlane.f32.xlu0 %v212
    %v214 = vpop.xlane.xlu0 %213
    %v215 = vrot.slane %v214, 4
    %v216 = vadd.f32 %v214, %v215
    %v217 = vrot.slane %v216, 2
    %v218 = vadd.f32 %v216, %v217
    %v219 = vrot.slane %v218, 1
    %v220 = vadd.f32 %v218, %v219
    %s221 = vtos %v220
    %v222 = vrcp.pop 255.0
    %s223 = vtos %v222
    %s224 = smul.f32 %s221, %s223
    %v225 = vstv %s224
    %v226 = vrcp.pop %v225
    %s227 = vtos %v226
    %s228 = smul.f32 %s227, -0.5
    %v229 = vstv %s224
    %v230 = vlog2.pop %v229
    %v231 = vmul.f32 %v230, 0.6931472
    %s232 = vtos %v231
    %s233 = sadd.f32 %s232, 1.837877
    %s234 = smul.f32 %s233, -16.0
    %v235 = vmul.f32 %v195, %v195
    %v236 = vsel %vm27, %v235, 0.0
    %237 = vadd.xlane.f32.xlu0 %v236
    %v238 = vpop.xlane.xlu0 %237
    %v239 = vstv %s227
    %v240 = vmul.f32 %v195, %v239
    %241 = vst.msk [vmem:[#allocation2] sm:$0xff] %vm27, %v240
    %v242 = vstv %s228
    %vm243 = vcmask 253952
    %244 = vst.msk [vmem:[#allocation4] sm:$0x1] %vm243, %v242
    %v245 = vmul.f32 %v242, %v238
    %v246 = vstv %s234
    %v247 = vadd.f32 %v246, %v245
    %vm248 = vcmask 7168
    %249 = vst.msk [vmem:[%s6] sm:$0xff] %vm248, %v247
    // Predicated region
    $region18: #{tpu_custom_call.1} parent=1 // pred_check
      _
    $region19: #{tpu_custom_call.1} parent=1 // pred_check_branch
      %251 = sbr.rel (0) target = $region21
    $region20: #{tpu_custom_call.1} parent=1 // pred_region
      %s253 = ssub.s32 128, 128
      %254 = vsyncadd [#allocation3], %s253
      %s256 = sshll.u32 [#allocation2], 4
      %s257 = int_to_ptr.vmem [resolvable:$true] %s256
      %259 = dma.vmem_to_hbm [thread:$0]  %s257, 128, %s4, [#allocation3]
    $region21: #{tpu_custom_call.1} parent=1 // pred_fallthru
      _
    // Predicated region
    $region22: #{tpu_custom_call.1} parent=1 // pred_check
      _
    $region23: #{tpu_custom_call.1} parent=1 // pred_check_branch
      %261 = sbr.rel (0) target = $region25
    $region24: #{tpu_custom_call.1} parent=1 // pred_region
      %s263 = ssub.s32 16, 16
      %264 = vsyncadd [#allocation5], %s263
      %s266 = sshll.u32 [#allocation4], 4
      %s267 = int_to_ptr.vmem [resolvable:$true] %s266
      %269 = dma.vmem_to_hbm [thread:$0]  %s267, 16, %s5, [#allocation5]
    $region25: #{tpu_custom_call.1} parent=1 // pred_fallthru
      _
    // Predicated region
    $region26: #{tpu_custom_call.1} parent=1 // pred_check
      _
    $region27: #{tpu_custom_call.1} parent=1 // pred_check_branch
      %271 = sbr.rel (0) target = $region29
    $region28: #{tpu_custom_call.1} parent=1 // pred_region
      _
    $region29: #{tpu_custom_call.1} parent=1 // pred_fallthru
      _
    // Predicated region
    $region30: #{tpu_custom_call.1} parent=1 // pred_check
      _
    $region31: #{tpu_custom_call.1} parent=1 // pred_check_branch
      %273 = sbr.rel (0) target = $region33
    $region32: #{tpu_custom_call.1} parent=1 // pred_region
      %274 = dma.done [#allocation3], 128
    $region33: #{tpu_custom_call.1} parent=1 // pred_fallthru
      _
    // Predicated region
    $region34: #{tpu_custom_call.1} parent=1 // pred_check
      _
    $region35: #{tpu_custom_call.1} parent=1 // pred_check_branch
      %276 = sbr.rel (0) target = $region37
    $region36: #{tpu_custom_call.1} parent=1 // pred_region
      %277 = dma.done [#allocation5], 16
    $region37: #{tpu_custom_call.1} parent=1 // pred_fallthru
      _
    // Predicated region
    $region38: #{tpu_custom_call.1} parent=1 // pred_check
      _
    $region39: #{tpu_custom_call.1} parent=1 // pred_check_branch
      %279 = sbr.rel (0) target = $region41
    $region40: #{tpu_custom_call.1} parent=1 // pred_region
      _
    $region41: #{tpu_custom_call.1} parent=1 // pred_fallthru
      _
    %280 = vsyncpa [#allocation3], 1
    %281 = vsyncpa [#allocation5], 1

</llo_original>
